<compile_context>
chip_gen: v5e
topology: v5e:2x2
jax: 0.10.0
libtpu: 0.0.40
codegen_flags: <defaults>
</compile_context>

<pallas_src>
import functools

import jax
import jax.numpy as jnp
from jax.experimental import pallas as pl
from jax.experimental.pallas import tpu as pltpu

_LANE = 128


def _round_up(n, m):
    return ((n + m - 1) // m) * m


# --------------------------------------------------------------------------- #
# Kernel
# --------------------------------------------------------------------------- #
def mlp_kernel(x_ref, w1_ref, b1_ref, w2_ref, b2_ref, w3_ref, b3_ref,
               w4_ref, b4_ref, o_ref):
    """Fused 4-layer MLP forward for one batch tile (all operands in VMEM).

    Matmul inputs are bf16 (MXU-native), accumulation/bias/ReLU in f32.
    Dropout = identity (eval mode).
    """
    cdt = w1_ref.dtype  # compute dtype for MXU inputs (bf16)
    x = x_ref[...]

    h = jnp.dot(x, w1_ref[...], preferred_element_type=jnp.float32) + b1_ref[...]
    h = jnp.maximum(h, 0.0)

    h = jnp.dot(h.astype(cdt), w2_ref[...],
                preferred_element_type=jnp.float32) + b2_ref[...]
    h = jnp.maximum(h, 0.0)

    h = jnp.dot(h.astype(cdt), w3_ref[...],
                preferred_element_type=jnp.float32) + b3_ref[...]
    h = jnp.maximum(h, 0.0)

    out = jnp.dot(h.astype(cdt), w4_ref[...],
                  preferred_element_type=jnp.float32) + b4_ref[...]
    o_ref[...] = out.astype(o_ref.dtype)


# --------------------------------------------------------------------------- #
# Generation-aware defaults (computed once, outside the per-call hot path)
# --------------------------------------------------------------------------- #
@functools.lru_cache(maxsize=None)
def _tpu_defaults():
    """Return (batch_tile, vmem_limit_bytes) tuned for the local TPU generation."""
    kind = ""
    try:
        kind = jax.devices()[0].device_kind.lower()
    except Exception:  # pragma: no cover - defensive
        pass

    vmem_bytes = None
    try:
        vmem_bytes = int(pltpu.get_tpu_info().vmem_capacity_bytes)
    except Exception:  # pragma: no cover - defensive
        pass

    # v7x: 64 MiB VMEM per TensorCore -> keep the requested limit well under it.
    small_vmem = ((vmem_bytes is not None and vmem_bytes <= 64 * 1024 * 1024)
                  or "v7" in kind or "7x" in kind)
    # v2-v5 generations have a 128x128 MXU -> 128-row tiles; v6e/v7x -> 256 rows.
    old_mxu = any(t in kind for t in ("v2", "v3", "v4", "v5"))

    batch_tile = 128 if old_mxu else 256
    if small_vmem:
        vmem_limit = 48 * 1024 * 1024
    elif kind:
        vmem_limit = 64 * 1024 * 1024
    else:
        vmem_limit = 32 * 1024 * 1024  # unknown backend: conservative, safe everywhere
    return batch_tile, vmem_limit


def _choose_tile(B, batch_tile):
    """Pick the batch-row tile. Always a multiple of 16 (bf16 sublane packing)."""
    batch_tile = max(16, _round_up(batch_tile, 16))
    B16 = _round_up(B, 16)
    # Small batches: a single grid step covering the whole (16-padded) batch.
    # Avoids per-step pipeline overhead, MXU work on all-zero padding rows, and
    # (on v7x) each TensorCore DMA-ing its own full copy of every weight.
    if B16 < 2 * batch_tile:
        return B16
    return batch_tile


# --------------------------------------------------------------------------- #
# One-time parameter preparation (padding + bf16 cast hoisted out of hot path)
# --------------------------------------------------------------------------- #
def prepare_params(params, compute_dtype=jnp.bfloat16):
    """Pad every weight/bias to lane-dense multiples of 128 and cast weights to
    bf16 ONCE. Returns (padded_params_dict, meta). Call at init / after each
    parameter update, not per forward call."""
    w1, b1 = params["layer1"]
    w2, b2 = params["layer2"]
    w3, b3 = params["layer3"]
    w4, b4 = params["outputlayer"]

    d_in, d_hid = w1.shape
    d_out = w4.shape[1]
    d_in_p = _round_up(d_in, _LANE)
    d_hid_p = _round_up(d_hid, _LANE)
    d_out_p = _round_up(d_out, _LANE)

    def pad2(a, rows, cols):
        return jnp.pad(a, ((0, rows - a.shape[0]), (0, cols - a.shape[1])))

    padded = {
        "w1": pad2(w1.astype(compute_dtype), d_in_p, d_hid_p),
        "w2": pad2(w2.astype(compute_dtype), d_hid_p, d_hid_p),
        "w3": pad2(w3.astype(compute_dtype), d_hid_p, d_hid_p),
        "w4": pad2(w4.astype(compute_dtype), d_hid_p, d_out_p),
        # biases stay f32 (f32 epilogue in-kernel)
        "b1": pad2(b1.astype(jnp.float32), 1, d_hid_p),
        "b2": pad2(b2.astype(jnp.float32), 1, d_hid_p),
        "b3": pad2(b3.astype(jnp.float32), 1, d_hid_p),
        "b4": pad2(b4.astype(jnp.float32), 1, d_out_p),
    }
    # Materialize now so nothing is re-padded / re-cast on the per-call path.
    padded = jax.tree_util.tree_map(jnp.asarray, padded)
    meta = {"d_in": d_in, "d_out": d_out}
    return padded, meta


# --------------------------------------------------------------------------- #
# Forward
# --------------------------------------------------------------------------- #
@functools.partial(jax.jit,
                   static_argnames=("d_out", "batch_tile", "vmem_limit_bytes"))
def _cnn_forward_padded(x, padded, *, d_out, batch_tile, vmem_limit_bytes):
    B, d_in = x.shape
    d_in_p, d_hid_p = padded["w1"].shape
    d_out_p = padded["w4"].shape[1]
    compute_dtype = padded["w1"].dtype

    tile = _choose_tile(B, batch_tile)
    B_p = _round_up(B, tile)
    grid = (B_p // tile,)

    # Only the activation tensor is padded per call (weights were padded once).
    xp = jnp.pad(x, ((0, B_p - B), (0, d_in_p - d_in))).astype(compute_dtype)

    # Weights/biases: same full block every grid step -> resident in VMEM.
    full = lambda shape: pl.BlockSpec(shape, lambda i: (0, 0))

    out_p = pl.pallas_call(
        mlp_kernel,
        out_shape=jax.ShapeDtypeStruct((B_p, d_out_p), jnp.float32),
        grid_spec=pltpu.PrefetchScalarGridSpec(
            num_scalar_prefetch=0,
            grid=grid,
            in_specs=[
                pl.BlockSpec((tile, d_in_p), lambda i: (i, 0)),   # x tile
                full((d_in_p, d_hid_p)), full((1, d_hid_p)),      # layer1
                full((d_hid_p, d_hid_p)), full((1, d_hid_p)),     # layer2
                full((d_hid_p, d_hid_p)), full((1, d_hid_p)),     # layer3
                full((d_hid_p, d_out_p)), full((1, d_out_p)),     # outputlayer
            ],
            out_specs=pl.BlockSpec((tile, d_out_p), lambda i: (i, 0)),
        ),
        compiler_params=pltpu.CompilerParams(
            dimension_semantics=("parallel",),          # >=2 steps -> both v7x TCs
            vmem_limit_bytes=vmem_limit_bytes,
        ),
    )(xp, padded["w1"], padded["b1"], padded["w2"], padded["b2"],
      padded["w3"], padded["b3"], padded["w4"], padded["b4"])

    # Strip batch/feature padding; return in the input dtype.
    return out_p[:B, :d_out].astype(x.dtype)


def cnn_forward(x, prepared):
    """x: [B, input]; prepared: output of prepare_params(params)."""
    padded, meta = prepared
    batch_tile, vmem_limit = _tpu_defaults()
    return _cnn_forward_padded(x, padded, d_out=meta["d_out"],
                               batch_tile=batch_tile,
                               vmem_limit_bytes=vmem_limit)


# --------------------------------------------------------------------------- #
# Init + pure-JAX reference
# --------------------------------------------------------------------------- #
def init_params(key, d_in, d_hid, d_out, dtype=jnp.float32):
    """Deterministic init mirroring torch.nn.Linear default (U[-1/sqrt(fan_in), +])."""
    def linear(k, fan_in, fan_out):
        kw, kb = jax.random.split(k)
        bound = 1.0 / jnp.sqrt(fan_in)
        # Stored as [in, out] (PyTorch's [out, in] transposed) for x @ W + b.
        w = jax.random.uniform(kw, (fan_in, fan_out), dtype, -bound, bound)
        b = jax.random.uniform(kb, (1, fan_out), dtype, -bound, bound)
        return w, b

    k1, k2, k3, k4 = jax.random.split(key, 4)
    return {
        "layer1": linear(k1, d_in, d_hid),
        "layer2": linear(k2, d_hid, d_hid),
        "layer3": linear(k3, d_hid, d_hid),
        "outputlayer": linear(k4, d_hid, d_out),
    }


def reference_forward(x, params, compute_dtype=jnp.bfloat16):
    """Pure-JAX reference with the same bf16-in / f32-accumulate mixed precision."""
    w1, b1 = params["layer1"]
    w2, b2 = params["layer2"]
    w3, b3 = params["layer3"]
    w4, b4 = params["outputlayer"]

    def lin(h, w, b):
        return jnp.dot(h.astype(compute_dtype), w.astype(compute_dtype),
                       preferred_element_type=jnp.float32) + b

    h = jnp.maximum(lin(x, w1, b1), 0.0)
    h = jnp.maximum(lin(h, w2, b2), 0.0)
    h = jnp.maximum(lin(h, w3, b3), 0.0)
    return lin(h, w4, b4)


if __name__ == "__main__":
    # Small shapes consistent with the module constructor (input, unitsize, output).
    B, D_IN, D_HID, D_OUT = 200, 32, 64, 16

    key = jax.random.PRNGKey(0)
    kx, kp, kx2 = jax.random.split(key, 3)
    x = jax.random.normal(kx, (B, D_IN), dtype=jnp.float32)
    params = init_params(kp, D_IN, D_HID, D_OUT)
    prepared = prepare_params(params)     # one-time pad + bf16 cast (hoisted)

    # Small batch: collapses to a single grid step (tile = round_up(200,16) = 208).
    out = jax.block_until_ready(cnn_forward(x, prepared))
    ref = reference_forward(x, params)
    assert out.shape == (B, D_OUT)
    assert jnp.allclose(out, ref, atol=1e-2, rtol=1e-2), "mismatch vs JAX reference"

    # Larger batch: exercises the multi-step grid path (128/256-row tiles).
    B2 = 600
    x2 = jax.random.normal(kx2, (B2, D_IN), dtype=jnp.float32)
    out2 = jax.block_until_ready(cnn_forward(x2, prepared))
    ref2 = reference_forward(x2, params)
    assert out2.shape == (B2, D_OUT)
    assert jnp.allclose(out2, ref2, atol=1e-2, rtol=1e-2), "mismatch vs JAX reference"

    print("KERNEL_OK")
</pallas_src>

<mosaic_0001>
module attributes {stable_mosaic.version = 11 : i64} {
  func.func @mlp_kernel(%arg0: i32, %arg1: memref<208x128xbf16, #tpu.memory_space<vmem>>, %arg2: memref<128x128xbf16, #tpu.memory_space<vmem>>, %arg3: memref<1x128xf32, #tpu.memory_space<vmem>>, %arg4: memref<128x128xbf16, #tpu.memory_space<vmem>>, %arg5: memref<1x128xf32, #tpu.memory_space<vmem>>, %arg6: memref<128x128xbf16, #tpu.memory_space<vmem>>, %arg7: memref<1x128xf32, #tpu.memory_space<vmem>>, %arg8: memref<128x128xbf16, #tpu.memory_space<vmem>>, %arg9: memref<1x128xf32, #tpu.memory_space<vmem>>, %arg10: memref<208x128xf32, #tpu.memory_space<vmem>>) attributes {dimension_semantics = [#tpu.dimension_semantics<parallel>], iteration_bounds = array<i64: 1>, scalar_prefetch = 0 : i64, scratch_operands = 0 : i64, tpu.core_type = #tpu.core_type<tc>, window_params = [{transform_indices = @transform_0, window_bounds = array<i64: 208, 128>}, {pipeline_mode = #tpu.pipeline_mode<synchronous>, transform_indices = @transform_1, window_bounds = array<i64: 128, 128>}, {pipeline_mode = #tpu.pipeline_mode<synchronous>, transform_indices = @transform_2, window_bounds = array<i64: 1, 128>}, {pipeline_mode = #tpu.pipeline_mode<synchronous>, transform_indices = @transform_3, window_bounds = array<i64: 128, 128>}, {pipeline_mode = #tpu.pipeline_mode<synchronous>, transform_indices = @transform_4, window_bounds = array<i64: 1, 128>}, {pipeline_mode = #tpu.pipeline_mode<synchronous>, transform_indices = @transform_5, window_bounds = array<i64: 128, 128>}, {pipeline_mode = #tpu.pipeline_mode<synchronous>, transform_indices = @transform_6, window_bounds = array<i64: 1, 128>}, {pipeline_mode = #tpu.pipeline_mode<synchronous>, transform_indices = @transform_7, window_bounds = array<i64: 128, 128>}, {pipeline_mode = #tpu.pipeline_mode<synchronous>, transform_indices = @transform_8, window_bounds = array<i64: 1, 128>}, {transform_indices = @transform_9, window_bounds = array<i64: 208, 128>}]} {
    %c0 = arith.constant 0 : index
    %c0_0 = arith.constant 0 : index
    %0 = vector.load %arg1[%c0, %c0_0] : memref<208x128xbf16, #tpu.memory_space<vmem>>, vector<208x128xbf16>
    %c0_1 = arith.constant 0 : index
    %c0_2 = arith.constant 0 : index
    %1 = vector.load %arg2[%c0_1, %c0_2] : memref<128x128xbf16, #tpu.memory_space<vmem>>, vector<128x128xbf16>
    %cst = arith.constant dense<0.000000e+00> : vector<208x128xf32>
    %2 = tpu.matmul %0, %1, %cst {dimension_numbers = #tpu.dot_dimension_numbers<[1], [0], [0], [1], [0, 0, 1, 1], [], []>} : vector<208x128xbf16>, vector<128x128xbf16>, vector<208x128xf32> -> vector<208x128xf32>
    %c0_3 = arith.constant 0 : index
    %c0_4 = arith.constant 0 : index
    %3 = vector.load %arg3[%c0_3, %c0_4] : memref<1x128xf32, #tpu.memory_space<vmem>>, vector<1x128xf32>
    %4 = vector.broadcast %3 : vector<1x128xf32> to vector<208x128xf32>
    %5 = arith.addf %2, %4 : vector<208x128xf32>
    %cst_5 = arith.constant 0.000000e+00 : f32
    %6 = vector.broadcast %cst_5 : f32 to vector<208x128xf32>
    %7 = arith.maximumf %5, %6 : vector<208x128xf32>
    %8 = arith.truncf %7 : vector<208x128xf32> to vector<208x128xbf16>
    %c0_6 = arith.constant 0 : index
    %c0_7 = arith.constant 0 : index
    %9 = vector.load %arg4[%c0_6, %c0_7] : memref<128x128xbf16, #tpu.memory_space<vmem>>, vector<128x128xbf16>
    %cst_8 = arith.constant dense<0.000000e+00> : vector<208x128xf32>
    %10 = tpu.matmul %8, %9, %cst_8 {dimension_numbers = #tpu.dot_dimension_numbers<[1], [0], [0], [1], [0, 0, 1, 1], [], []>} : vector<208x128xbf16>, vector<128x128xbf16>, vector<208x128xf32> -> vector<208x128xf32>
    %c0_9 = arith.constant 0 : index
    %c0_10 = arith.constant 0 : index
    %11 = vector.load %arg5[%c0_9, %c0_10] : memref<1x128xf32, #tpu.memory_space<vmem>>, vector<1x128xf32>
    %12 = vector.broadcast %11 : vector<1x128xf32> to vector<208x128xf32>
    %13 = arith.addf %10, %12 : vector<208x128xf32>
    %cst_11 = arith.constant 0.000000e+00 : f32
    %14 = vector.broadcast %cst_11 : f32 to vector<208x128xf32>
    %15 = arith.maximumf %13, %14 : vector<208x128xf32>
    %16 = arith.truncf %15 : vector<208x128xf32> to vector<208x128xbf16>
    %c0_12 = arith.constant 0 : index
    %c0_13 = arith.constant 0 : index
    %17 = vector.load %arg6[%c0_12, %c0_13] : memref<128x128xbf16, #tpu.memory_space<vmem>>, vector<128x128xbf16>
    %cst_14 = arith.constant dense<0.000000e+00> : vector<208x128xf32>
    %18 = tpu.matmul %16, %17, %cst_14 {dimension_numbers = #tpu.dot_dimension_numbers<[1], [0], [0], [1], [0, 0, 1, 1], [], []>} : vector<208x128xbf16>, vector<128x128xbf16>, vector<208x128xf32> -> vector<208x128xf32>
    %c0_15 = arith.constant 0 : index
    %c0_16 = arith.constant 0 : index
    %19 = vector.load %arg7[%c0_15, %c0_16] : memref<1x128xf32, #tpu.memory_space<vmem>>, vector<1x128xf32>
    %20 = vector.broadcast %19 : vector<1x128xf32> to vector<208x128xf32>
    %21 = arith.addf %18, %20 : vector<208x128xf32>
    %cst_17 = arith.constant 0.000000e+00 : f32
    %22 = vector.broadcast %cst_17 : f32 to vector<208x128xf32>
    %23 = arith.maximumf %21, %22 : vector<208x128xf32>
    %24 = arith.truncf %23 : vector<208x128xf32> to vector<208x128xbf16>
    %c0_18 = arith.constant 0 : index
    %c0_19 = arith.constant 0 : index
    %25 = vector.load %arg8[%c0_18, %c0_19] : memref<128x128xbf16, #tpu.memory_space<vmem>>, vector<128x128xbf16>
    %cst_20 = arith.constant dense<0.000000e+00> : vector<208x128xf32>
    %26 = tpu.matmul %24, %25, %cst_20 {dimension_numbers = #tpu.dot_dimension_numbers<[1], [0], [0], [1], [0, 0, 1, 1], [], []>} : vector<208x128xbf16>, vector<128x128xbf16>, vector<208x128xf32> -> vector<208x128xf32>
    %c0_21 = arith.constant 0 : index
    %c0_22 = arith.constant 0 : index
    %27 = vector.load %arg9[%c0_21, %c0_22] : memref<1x128xf32, #tpu.memory_space<vmem>>, vector<1x128xf32>
    %28 = vector.broadcast %27 : vector<1x128xf32> to vector<208x128xf32>
    %29 = arith.addf %26, %28 : vector<208x128xf32>
    %c0_23 = arith.constant 0 : index
    %c0_24 = arith.constant 0 : index
    %30 = vector.load %arg10[%c0_23, %c0_24] : memref<208x128xf32, #tpu.memory_space<vmem>>, vector<208x128xf32>
    tpu.vector_store %arg10[%c0_23, %c0_24], %29 {strides = array<i32>} : memref<208x128xf32, #tpu.memory_space<vmem>>, vector<208x128xf32>,
    return
  }
  func.func @transform_0(%arg0: i32) -> (i32, i32) {
    %c0_i32 = arith.constant 0 : i32
    %c0_i32_0 = arith.constant 0 : i32
    return %arg0, %c0_i32 : i32, i32
  }
  func.func @transform_1(%arg0: i32) -> (i32, i32) {
    %c0_i32 = arith.constant 0 : i32
    %c0_i32_0 = arith.constant 0 : i32
    %c0_i32_1 = arith.constant 0 : i32
    return %c0_i32, %c0_i32_0 : i32, i32
  }
  func.func @transform_2(%arg0: i32) -> (i32, i32) {
    %c0_i32 = arith.constant 0 : i32
    %c0_i32_0 = arith.constant 0 : i32
    %c0_i32_1 = arith.constant 0 : i32
    return %c0_i32, %c0_i32_0 : i32, i32
  }
  func.func @transform_3(%arg0: i32) -> (i32, i32) {
    %c0_i32 = arith.constant 0 : i32
    %c0_i32_0 = arith.constant 0 : i32
    %c0_i32_1 = arith.constant 0 : i32
    return %c0_i32, %c0_i32_0 : i32, i32
  }
  func.func @transform_4(%arg0: i32) -> (i32, i32) {
    %c0_i32 = arith.constant 0 : i32
    %c0_i32_0 = arith.constant 0 : i32
    %c0_i32_1 = arith.constant 0 : i32
    return %c0_i32, %c0_i32_0 : i32, i32
  }
  func.func @transform_5(%arg0: i32) -> (i32, i32) {
    %c0_i32 = arith.constant 0 : i32
    %c0_i32_0 = arith.constant 0 : i32
    %c0_i32_1 = arith.constant 0 : i32
    return %c0_i32, %c0_i32_0 : i32, i32
  }
  func.func @transform_6(%arg0: i32) -> (i32, i32) {
    %c0_i32 = arith.constant 0 : i32
    %c0_i32_0 = arith.constant 0 : i32
    %c0_i32_1 = arith.constant 0 : i32
    return %c0_i32, %c0_i32_0 : i32, i32
  }
  func.func @transform_7(%arg0: i32) -> (i32, i32) {
    %c0_i32 = arith.constant 0 : i32
    %c0_i32_0 = arith.constant 0 : i32
    %c0_i32_1 = arith.constant 0 : i32
    return %c0_i32, %c0_i32_0 : i32, i32
  }
  func.func @transform_8(%arg0: i32) -> (i32, i32) {
    %c0_i32 = arith.constant 0 : i32
    %c0_i32_0 = arith.constant 0 : i32
    %c0_i32_1 = arith.constant 0 : i32
    return %c0_i32, %c0_i32_0 : i32, i32
  }
  func.func @transform_9(%arg0: i32) -> (i32, i32) {
    %c0_i32 = arith.constant 0 : i32
    %c0_i32_0 = arith.constant 0 : i32
    return %arg0, %c0_i32 : i32, i32
  }
}

</mosaic_0001>

<llo_original>
// kernel: _cnn_forward_padded.1
$region0: #{_cnn_forward_padded.1}
  #allocation0 [shape = 'u32[]', space=smem, size = 0x4, offset = 0x4, fixed_abs, tag = 'smem constant byte address 0x4 - core index']
  #allocation1 [shape = 'u32[72,128]{1,0:T(1,128)}', space=vmem, size = 0x9000, scoped, tag = 'internal scratch']
  %s0 = inlined_call_operand.vmem [shape: bf16[208,128], index: 0, kind: input, shape index: {}]
  %s1 = inlined_call_operand.vmem [shape: bf16[128,128], index: 1, kind: input, shape index: {}]
  %s2 = inlined_call_operand.vmem [shape: f32[1,128], index: 2, kind: input, shape index: {}]
  %s3 = inlined_call_operand.vmem [shape: bf16[128,128], index: 3, kind: input, shape index: {}]
  %s4 = inlined_call_operand.vmem [shape: f32[1,128], index: 4, kind: input, shape index: {}]
  %s5 = inlined_call_operand.vmem [shape: bf16[128,128], index: 5, kind: input, shape index: {}]
  %s6 = inlined_call_operand.vmem [shape: f32[1,128], index: 6, kind: input, shape index: {}]
  %s7 = inlined_call_operand.vmem [shape: bf16[128,128], index: 7, kind: input, shape index: {}]
  %s8 = inlined_call_operand.vmem [shape: f32[1,128], index: 8, kind: input, shape index: {}]
  %s9 = inlined_call_operand.vmem [shape: f32[208,128], index: 9, kind: output, shape index: {}]
  %s10 = sld [smem:[#allocation0]]
  $region46: #{_cnn_forward_padded.1} parent=0
    _
  %s12 = ssub.s32 1, %s10
  %s13 = scalar_select 0, %s12, %s10
  // Predicated region
  $region2: #{_cnn_forward_padded.1} parent=0 // pred_check
    _
  $region3: #{_cnn_forward_padded.1} parent=0 // pred_check_branch
    %15 = sbr.rel (0) target = $region5
  $region4: #{_cnn_forward_padded.1} parent=0 // pred_region
    _
  $region5: #{_cnn_forward_padded.1} parent=0 // pred_fallthru
    _
  // Predicated region
  $region6: #{_cnn_forward_padded.1} parent=0 // pred_check
    _
  $region7: #{_cnn_forward_padded.1} parent=0 // pred_check_branch
    %17 = sbr.rel (0) target = $region9
  $region8: #{_cnn_forward_padded.1} parent=0 // pred_region
    _
  $region9: #{_cnn_forward_padded.1} parent=0 // pred_fallthru
    _
  // Predicated region
  $region10: #{_cnn_forward_padded.1} parent=0 // pred_check
    _
  $region11: #{_cnn_forward_padded.1} parent=0 // pred_check_branch
    %19 = sbr.rel (0) target = $region13
  $region12: #{_cnn_forward_padded.1} parent=0 // pred_region
    _
  $region13: #{_cnn_forward_padded.1} parent=0 // pred_fallthru
    _
  // Predicated region
  $region14: #{_cnn_forward_padded.1} parent=0 // pred_check
    _
  $region15: #{_cnn_forward_padded.1} parent=0 // pred_check_branch
    %21 = sbr.rel (0) target = $region17
  $region16: #{_cnn_forward_padded.1} parent=0 // pred_region
    _
  $region17: #{_cnn_forward_padded.1} parent=0 // pred_fallthru
    _
  // Predicated region
  $region18: #{_cnn_forward_padded.1} parent=0 // pred_check
    _
  $region19: #{_cnn_forward_padded.1} parent=0 // pred_check_branch
    %23 = sbr.rel (0) target = $region21
  $region20: #{_cnn_forward_padded.1} parent=0 // pred_region
    _
  $region21: #{_cnn_forward_padded.1} parent=0 // pred_fallthru
    _
  // Predicated region
  $region22: #{_cnn_forward_padded.1} parent=0 // pred_check
    _
  $region23: #{_cnn_forward_padded.1} parent=0 // pred_check_branch
    %25 = sbr.rel (0) target = $region25
  $region24: #{_cnn_forward_padded.1} parent=0 // pred_region
    _
  $region25: #{_cnn_forward_padded.1} parent=0 // pred_fallthru
    _
  // Predicated region
  $region26: #{_cnn_forward_padded.1} parent=0 // pred_check
    _
  $region27: #{_cnn_forward_padded.1} parent=0 // pred_check_branch
    %27 = sbr.rel (0) target = $region29
  $region28: #{_cnn_forward_padded.1} parent=0 // pred_region
    _
  $region29: #{_cnn_forward_padded.1} parent=0 // pred_fallthru
    _
  // Predicated region
  $region30: #{_cnn_forward_padded.1} parent=0 // pred_check
    _
  $region31: #{_cnn_forward_padded.1} parent=0 // pred_check_branch
    %29 = sbr.rel (0) target = $region33
  $region32: #{_cnn_forward_padded.1} parent=0 // pred_region
    _
  $region33: #{_cnn_forward_padded.1} parent=0 // pred_fallthru
    _
  // Predicated region
  $region34: #{_cnn_forward_padded.1} parent=0 // pred_check
    _
  $region35: #{_cnn_forward_padded.1} parent=0 // pred_check_branch
    %31 = sbr.rel (0) target = $region37
  $region36: #{_cnn_forward_padded.1} parent=0 // pred_region
    _
  $region37: #{_cnn_forward_padded.1} parent=0 // pred_fallthru
    _
  %v32 = vld [vmem:[%s0] sm:$0xf]
  %v33 = vld [vmem:[%s0 + $0x4] sm:$0xf]
  %v34 = vld [vmem:[%s0 + $0x8] sm:$0xf]
  %v35 = vld [vmem:[%s0 + $0xc] sm:$0xf]
  %v36 = vld [vmem:[%s0 + $0x10] sm:$0xf]
  %v37 = vld [vmem:[%s0 + $0x14] sm:$0xf]
  %v38 = vld [vmem:[%s0 + $0x18] sm:$0xf]
  %v39 = vld [vmem:[%s0 + $0x1c] sm:$0xf]
  %v40 = vld [vmem:[%s0 + $0x20] sm:$0xf]
  %v41 = vld [vmem:[%s0 + $0x24] sm:$0xf]
  %v42 = vld [vmem:[%s0 + $0x28] sm:$0xf]
  %v43 = vld [vmem:[%s0 + $0x2c] sm:$0xf]
  %v44 = vld [vmem:[%s0 + $0x30] sm:$0xf]
  %v45 = vld [vmem:[%s0 + $0x34] sm:$0xf]
  %v46 = vld [vmem:[%s0 + $0x38] sm:$0xf]
  %v47 = vld [vmem:[%s0 + $0x3c] sm:$0xf]
  %v48 = vld [vmem:[%s0 + $0x40] sm:$0xf]
  %v49 = vld [vmem:[%s0 + $0x44] sm:$0xf]
  %v50 = vld [vmem:[%s0 + $0x48] sm:$0xf]
  %v51 = vld [vmem:[%s0 + $0x4c] sm:$0xf]
  %v52 = vld [vmem:[%s0 + $0x50] sm:$0xf]
  %v53 = vld [vmem:[%s0 + $0x54] sm:$0xf]
  %v54 = vld [vmem:[%s0 + $0x58] sm:$0xf]
  %v55 = vld [vmem:[%s0 + $0x5c] sm:$0xf]
  %v56 = vld [vmem:[%s0 + $0x60] sm:$0xf]
  %v57 = vld [vmem:[%s0 + $0x64] sm:$0xf]
  %v58 = vld [vmem:[%s1] sm:$0xf]
  %v59 = vld [vmem:[%s1 + $0x4] sm:$0xf]
  %v60 = vld [vmem:[%s1 + $0x8] sm:$0xf]
  %v61 = vld [vmem:[%s1 + $0xc] sm:$0xf]
  %v62 = vld [vmem:[%s1 + $0x10] sm:$0xf]
  %v63 = vld [vmem:[%s1 + $0x14] sm:$0xf]
  %v64 = vld [vmem:[%s1 + $0x18] sm:$0xf]
  %v65 = vld [vmem:[%s1 + $0x1c] sm:$0xf]
  %v66 = vld [vmem:[%s1 + $0x20] sm:$0xf]
  %v67 = vld [vmem:[%s1 + $0x24] sm:$0xf]
  %v68 = vld [vmem:[%s1 + $0x28] sm:$0xf]
  %v69 = vld [vmem:[%s1 + $0x2c] sm:$0xf]
  %v70 = vld [vmem:[%s1 + $0x30] sm:$0xf]
  %v71 = vld [vmem:[%s1 + $0x34] sm:$0xf]
  %v72 = vld [vmem:[%s1 + $0x38] sm:$0xf]
  %v73 = vld [vmem:[%s1 + $0x3c] sm:$0xf]
  %v74 = vld [vmem:[%s2] sm:$0x1]
  %v76 = vperm.slane %v74, 0
  %v104 = vunpack.c.l.b16 %v32
  %v105 = vunpack.c.l.b16 %v33
  %v106 = vunpack.c.l.b16 %v34
  %v107 = vunpack.c.l.b16 %v35
  %v108 = vunpack.c.l.b16 %v36
  %v109 = vunpack.c.l.b16 %v37
  %v110 = vunpack.c.l.b16 %v38
  %v111 = vunpack.c.l.b16 %v39
  %v112 = vunpack.c.l.b16 %v40
  %v113 = vunpack.c.l.b16 %v41
  %v114 = vunpack.c.l.b16 %v42
  %v115 = vunpack.c.l.b16 %v43
  %v116 = vunpack.c.l.b16 %v44
  %v117 = vunpack.c.l.b16 %v45
  %v118 = vunpack.c.l.b16 %v46
  %v119 = vunpack.c.l.b16 %v47
  %v120 = vunpack.c.l.b16 %v48
  %v121 = vunpack.c.l.b16 %v49
  %v122 = vunpack.c.l.b16 %v50
  %v123 = vunpack.c.l.b16 %v51
  %v124 = vunpack.c.l.b16 %v52
  %v125 = vunpack.c.l.b16 %v53
  %v126 = vunpack.c.l.b16 %v54
  %v127 = vunpack.c.l.b16 %v55
  %v128 = vunpack.c.l.b16 %v56
  %v129 = vunpack.c.l.b16 %v57
  %v130 = vpack.c.b16 %v105, %v104
  %v131 = vpack.c.b16 %v107, %v106
  %v132 = vpack.c.b16 %v109, %v108
  %v133 = vpack.c.b16 %v111, %v110
  %v134 = vpack.c.b16 %v113, %v112
  %v135 = vpack.c.b16 %v115, %v114
  %v136 = vpack.c.b16 %v117, %v116
  %v137 = vpack.c.b16 %v119, %v118
  %v138 = vpack.c.b16 %v121, %v120
  %v139 = vpack.c.b16 %v123, %v122
  %v140 = vpack.c.b16 %v125, %v124
  %v141 = vpack.c.b16 %v127, %v126
  %v142 = vpack.c.b16 %v129, %v128
  %v172 = vunpack.c.l.b16 %v58
  %v173 = vunpack.c.l.b16 %v59
  %v174 = vunpack.c.l.b16 %v60
  %v175 = vunpack.c.l.b16 %v61
  %v176 = vunpack.c.l.b16 %v62
  %v177 = vunpack.c.l.b16 %v63
  %v178 = vunpack.c.l.b16 %v64
  %v179 = vunpack.c.l.b16 %v65
  %v180 = vunpack.c.l.b16 %v66
  %v181 = vunpack.c.l.b16 %v67
  %v182 = vunpack.c.l.b16 %v68
  %v183 = vunpack.c.l.b16 %v69
  %v184 = vunpack.c.l.b16 %v70
  %v185 = vunpack.c.l.b16 %v71
  %v186 = vunpack.c.l.b16 %v72
  %v187 = vunpack.c.l.b16 %v73
  %v188 = vpack.c.b16 %v173, %v172
  %v189 = vpack.c.b16 %v175, %v174
  %v190 = vpack.c.b16 %v177, %v176
  %v191 = vpack.c.b16 %v179, %v178
  %v192 = vpack.c.b16 %v181, %v180
  %v193 = vpack.c.b16 %v183, %v182
  %v194 = vpack.c.b16 %v185, %v184
  %v195 = vpack.c.b16 %v187, %v186
  %204 = vmatpush.bf16.msra.mxu0 %v195
  %205 = vmatpush.bf16.msra.mxu0 %v194
  %206 = vmatpush.bf16.msra.mxu0 %v193
  %207 = vmatpush.bf16.msra.mxu0 %v192
  %208 = vmatpush.bf16.msra.mxu0 %v191
  %209 = vmatpush.bf16.msra.mxu0 %v190
  %210 = vmatpush.bf16.msra.mxu0 %v189
  %211 = vmatpush.bf16.msra.mxu0 %v188
  %212 = vmatmul.bf16.gmra.mxu0 %v130
  %v213 = vpop.f32.mrf.mxu0
  %v214 = vadd.f32 %v76, %v213
  %v215 = vpop.f32.mrf.mxu0
  %v216 = vadd.f32 %v76, %v215
  %217 = vmatmul.bf16.gmra.mxu0 %v131
  %v218 = vpop.f32.mrf.mxu0
  %v219 = vadd.f32 %v76, %v218
  %v220 = vpop.f32.mrf.mxu0
  %v221 = vadd.f32 %v76, %v220
  %222 = vmatmul.bf16.gmra.mxu0 %v132
  %v223 = vpop.f32.mrf.mxu0
  %v224 = vadd.f32 %v76, %v223
  %v225 = vpop.f32.mrf.mxu0
  %v226 = vadd.f32 %v76, %v225
  %227 = vmatmul.bf16.gmra.mxu0 %v133
  %v228 = vpop.f32.mrf.mxu0
  %v229 = vadd.f32 %v76, %v228
  %v230 = vpop.f32.mrf.mxu0
  %v231 = vadd.f32 %v76, %v230
  %232 = vmatmul.bf16.gmra.mxu0 %v134
  %v233 = vpop.f32.mrf.mxu0
  %v234 = vadd.f32 %v76, %v233
  %v235 = vpop.f32.mrf.mxu0
  %v236 = vadd.f32 %v76, %v235
  %237 = vmatmul.bf16.gmra.mxu0 %v135
  %v238 = vpop.f32.mrf.mxu0
  %v239 = vadd.f32 %v76, %v238
  %v240 = vpop.f32.mrf.mxu0
  %v241 = vadd.f32 %v76, %v240
  %242 = vmatmul.bf16.gmra.mxu0 %v136
  %v243 = vpop.f32.mrf.mxu0
  %v244 = vadd.f32 %v76, %v243
  %v245 = vpop.f32.mrf.mxu0
  %v246 = vadd.f32 %v76, %v245
  %247 = vmatmul.bf16.gmra.mxu0 %v137
  %v248 = vpop.f32.mrf.mxu0
  %v249 = vadd.f32 %v76, %v248
  %v250 = vpop.f32.mrf.mxu0
  %v251 = vadd.f32 %v76, %v250
  %252 = vmatmul.bf16.gmra.mxu0 %v138
  %v253 = vpop.f32.mrf.mxu0
  %v254 = vadd.f32 %v76, %v253
  %v255 = vpop.f32.mrf.mxu0
  %v256 = vadd.f32 %v76, %v255
  %257 = vmatmul.bf16.gmra.mxu0 %v139
  %v258 = vpop.f32.mrf.mxu0
  %v259 = vadd.f32 %v76, %v258
  %v260 = vpop.f32.mrf.mxu0
  %v261 = vadd.f32 %v76, %v260
  %262 = vmatmul.bf16.gmra.mxu0 %v140
  %v263 = vpop.f32.mrf.mxu0
  %v264 = vadd.f32 %v76, %v263
  %v265 = vpop.f32.mrf.mxu0
  %v266 = vadd.f32 %v76, %v265
  %267 = vmatmul.bf16.gmra.mxu0 %v141
  %v268 = vpop.f32.mrf.mxu0
  %v269 = vadd.f32 %v76, %v268
  %v270 = vpop.f32.mrf.mxu0
  %v271 = vadd.f32 %v76, %v270
  %272 = vmatmul.bf16.gmra.mxu0 %v142
  %v273 = vpop.f32.mrf.mxu0
  %v274 = vadd.f32 %v76, %v273
  %v275 = vpop.f32.mrf.mxu0
  %v276 = vadd.f32 %v76, %v275
  %277 = vdwg.mxu0
  %v278 = vmax.f32 %v214, 0.0
  %v279 = vmax.f32 %v216, 0.0
  %v280 = vmax.f32 %v219, 0.0
  %v281 = vmax.f32 %v221, 0.0
  %v282 = vmax.f32 %v224, 0.0
  %v283 = vmax.f32 %v226, 0.0
  %v284 = vmax.f32 %v229, 0.0
  %v285 = vmax.f32 %v231, 0.0
  %v286 = vmax.f32 %v234, 0.0
  %v287 = vmax.f32 %v236, 0.0
  %v288 = vmax.f32 %v239, 0.0
  %v289 = vmax.f32 %v241, 0.0
  %v290 = vmax.f32 %v244, 0.0
  %v291 = vmax.f32 %v246, 0.0
  %v292 = vmax.f32 %v249, 0.0
  %v293 = vmax.f32 %v251, 0.0
  %v294 = vmax.f32 %v254, 0.0
  %v295 = vmax.f32 %v256, 0.0
  %v296 = vmax.f32 %v259, 0.0
  %v297 = vmax.f32 %v261, 0.0
  %v298 = vmax.f32 %v264, 0.0
  %v299 = vmax.f32 %v266, 0.0
  %v300 = vmax.f32 %v269, 0.0
  %v301 = vmax.f32 %v271, 0.0
  %v302 = vmax.f32 %v274, 0.0
  %v303 = vmax.f32 %v276, 0.0
  %v304 = vpack.c.bf16 %v279, %v278
  %v305 = vpack.c.bf16 %v281, %v280
  %v306 = vpack.c.bf16 %v283, %v282
  %v307 = vpack.c.bf16 %v285, %v284
  %v308 = vpack.c.bf16 %v287, %v286
  %v309 = vpack.c.bf16 %v289, %v288
  %v310 = vpack.c.bf16 %v291, %v290
  %v311 = vpack.c.bf16 %v293, %v292
  %v312 = vpack.c.bf16 %v295, %v294
  %v313 = vpack.c.bf16 %v297, %v296
  %v314 = vpack.c.bf16 %v299, %v298
  %v315 = vpack.c.bf16 %v301, %v300
  %v316 = vpack.c.bf16 %v303, %v302
  %v317 = vld [vmem:[%s3] sm:$0xf]
  %v318 = vld [vmem:[%s3 + $0x4] sm:$0xf]
  %v319 = vld [vmem:[%s3 + $0x8] sm:$0xf]
  %v320 = vld [vmem:[%s3 + $0xc] sm:$0xf]
  %v321 = vld [vmem:[%s3 + $0x10] sm:$0xf]
  %v322 = vld [vmem:[%s3 + $0x14] sm:$0xf]
  %v323 = vld [vmem:[%s3 + $0x18] sm:$0xf]
  %v324 = vld [vmem:[%s3 + $0x1c] sm:$0xf]
  %v325 = vld [vmem:[%s3 + $0x20] sm:$0xf]
  %v326 = vld [vmem:[%s3 + $0x24] sm:$0xf]
  %v327 = vld [vmem:[%s3 + $0x28] sm:$0xf]
  %v328 = vld [vmem:[%s3 + $0x2c] sm:$0xf]
  %v329 = vld [vmem:[%s3 + $0x30] sm:$0xf]
  %v330 = vld [vmem:[%s3 + $0x34] sm:$0xf]
  %v331 = vld [vmem:[%s3 + $0x38] sm:$0xf]
  %v332 = vld [vmem:[%s3 + $0x3c] sm:$0xf]
  %v333 = vld [vmem:[%s4] sm:$0x1]
  %v335 = vperm.slane %v333, 0
  %v353 = vunpack.c.l.b16 %v317
  %v354 = vunpack.c.l.b16 %v318
  %v355 = vunpack.c.l.b16 %v319
  %v356 = vunpack.c.l.b16 %v320
  %v357 = vunpack.c.l.b16 %v321
  %v358 = vunpack.c.l.b16 %v322
  %v359 = vunpack.c.l.b16 %v323
  %v360 = vunpack.c.l.b16 %v324
  %v361 = vunpack.c.l.b16 %v325
  %v362 = vunpack.c.l.b16 %v326
  %v363 = vunpack.c.l.b16 %v327
  %v364 = vunpack.c.l.b16 %v328
  %v365 = vunpack.c.l.b16 %v329
  %v366 = vunpack.c.l.b16 %v330
  %v367 = vunpack.c.l.b16 %v331
  %v368 = vunpack.c.l.b16 %v332
  %v369 = vpack.c.b16 %v354, %v353
  %v370 = vpack.c.b16 %v356, %v355
  %v371 = vpack.c.b16 %v358, %v357
  %v372 = vpack.c.b16 %v360, %v359
  %v373 = vpack.c.b16 %v362, %v361
  %v374 = vpack.c.b16 %v364, %v363
  %v375 = vpack.c.b16 %v366, %v365
  %v376 = vpack.c.b16 %v368, %v367
  %385 = vmatpush.bf16.msra.mxu0 %v376
  %386 = vmatpush.bf16.msra.mxu0 %v375
  %387 = vmatpush.bf16.msra.mxu0 %v374
  %388 = vmatpush.bf16.msra.mxu0 %v373
  %389 = vmatpush.bf16.msra.mxu0 %v372
  %390 = vmatpush.bf16.msra.mxu0 %v371
  %391 = vmatpush.bf16.msra.mxu0 %v370
  %392 = vmatpush.bf16.msra.mxu0 %v369
  %393 = vmatmul.bf16.gmra.mxu0 %v304
  %v394 = vpop.f32.mrf.mxu0
  %v395 = vadd.f32 %v335, %v394
  %v396 = vpop.f32.mrf.mxu0
  %v397 = vadd.f32 %v335, %v396
  %398 = vmatmul.bf16.gmra.mxu0 %v305
  %v399 = vpop.f32.mrf.mxu0
  %v400 = vadd.f32 %v335, %v399
  %v401 = vpop.f32.mrf.mxu0
  %v402 = vadd.f32 %v335, %v401
  %403 = vmatmul.bf16.gmra.mxu0 %v306
  %v404 = vpop.f32.mrf.mxu0
  %v405 = vadd.f32 %v335, %v404
  %v406 = vpop.f32.mrf.mxu0
  %v407 = vadd.f32 %v335, %v406
  %408 = vmatmul.bf16.gmra.mxu0 %v307
  %v409 = vpop.f32.mrf.mxu0
  %v410 = vadd.f32 %v335, %v409
  %v411 = vpop.f32.mrf.mxu0
  %v412 = vadd.f32 %v335, %v411
  %413 = vmatmul.bf16.gmra.mxu0 %v308
  %v414 = vpop.f32.mrf.mxu0
  %v415 = vadd.f32 %v335, %v414
  %v416 = vpop.f32.mrf.mxu0
  %v417 = vadd.f32 %v335, %v416
  %418 = vmatmul.bf16.gmra.mxu0 %v309
  %v419 = vpop.f32.mrf.mxu0
  %v420 = vadd.f32 %v335, %v419
  %v421 = vpop.f32.mrf.mxu0
  %v422 = vadd.f32 %v335, %v421
  %423 = vmatmul.bf16.gmra.mxu0 %v310
  %v424 = vpop.f32.mrf.mxu0
  %v425 = vadd.f32 %v335, %v424
  %v426 = vpop.f32.mrf.mxu0
  %v427 = vadd.f32 %v335, %v426
  %428 = vmatmul.bf16.gmra.mxu0 %v311
  %v429 = vpop.f32.mrf.mxu0
  %v430 = vadd.f32 %v335, %v429
  %v431 = vpop.f32.mrf.mxu0
  %v432 = vadd.f32 %v335, %v431
  %433 = vmatmul.bf16.gmra.mxu0 %v312
  %v434 = vpop.f32.mrf.mxu0
  %v435 = vadd.f32 %v335, %v434
  %v436 = vpop.f32.mrf.mxu0
  %v437 = vadd.f32 %v335, %v436
  %438 = vmatmul.bf16.gmra.mxu0 %v313
  %v439 = vpop.f32.mrf.mxu0
  %v440 = vadd.f32 %v335, %v439
  %v441 = vpop.f32.mrf.mxu0
  %v442 = vadd.f32 %v335, %v441
  %443 = vmatmul.bf16.gmra.mxu0 %v314
  %v444 = vpop.f32.mrf.mxu0
  %v445 = vadd.f32 %v335, %v444
  %v446 = vpop.f32.mrf.mxu0
  %v447 = vadd.f32 %v335, %v446
  %448 = vmatmul.bf16.gmra.mxu0 %v315
  %v449 = vpop.f32.mrf.mxu0
  %v450 = vadd.f32 %v335, %v449
  %v451 = vpop.f32.mrf.mxu0
  %v452 = vadd.f32 %v335, %v451
  %453 = vmatmul.bf16.gmra.mxu0 %v316
  %v454 = vpop.f32.mrf.mxu0
  %v455 = vadd.f32 %v335, %v454
  %v456 = vpop.f32.mrf.mxu0
  %v457 = vadd.f32 %v335, %v456
  %458 = vdwg.mxu0
  %v459 = vmax.f32 %v395, 0.0
  %v460 = vmax.f32 %v397, 0.0
  %v461 = vmax.f32 %v400, 0.0
  %v462 = vmax.f32 %v402, 0.0
  %v463 = vmax.f32 %v405, 0.0
  %v464 = vmax.f32 %v407, 0.0
  %v465 = vmax.f32 %v410, 0.0
  %v466 = vmax.f32 %v412, 0.0
  %v467 = vmax.f32 %v415, 0.0
  %v468 = vmax.f32 %v417, 0.0
  %v469 = vmax.f32 %v420, 0.0
  %v470 = vmax.f32 %v422, 0.0
  %v471 = vmax.f32 %v425, 0.0
  %v472 = vmax.f32 %v427, 0.0
  %v473 = vmax.f32 %v430, 0.0
  %v474 = vmax.f32 %v432, 0.0
  %v475 = vmax.f32 %v435, 0.0
  %v476 = vmax.f32 %v437, 0.0
  %v477 = vmax.f32 %v440, 0.0
  %v478 = vmax.f32 %v442, 0.0
  %v479 = vmax.f32 %v445, 0.0
  %v480 = vmax.f32 %v447, 0.0
  %v481 = vmax.f32 %v450, 0.0
  %v482 = vmax.f32 %v452, 0.0
  %v483 = vmax.f32 %v455, 0.0
  %v484 = vmax.f32 %v457, 0.0
  %v485 = vpack.c.bf16 %v460, %v459
  %v486 = vpack.c.bf16 %v462, %v461
  %v487 = vpack.c.bf16 %v464, %v463
  %v488 = vpack.c.bf16 %v466, %v465
  %v489 = vpack.c.bf16 %v468, %v467
  %v490 = vpack.c.bf16 %v470, %v469
  %v491 = vpack.c.bf16 %v472, %v471
  %v492 = vpack.c.bf16 %v474, %v473
  %v493 = vpack.c.bf16 %v476, %v475
  %v494 = vpack.c.bf16 %v478, %v477
  %v495 = vpack.c.bf16 %v480, %v479
  %v496 = vpack.c.bf16 %v482, %v481
  %v497 = vpack.c.bf16 %v484, %v483
  %v498 = vld [vmem:[%s5] sm:$0xf]
  %v499 = vld [vmem:[%s5 + $0x4] sm:$0xf]
  %v500 = vld [vmem:[%s5 + $0x8] sm:$0xf]
  %v501 = vld [vmem:[%s5 + $0xc] sm:$0xf]
  %v502 = vld [vmem:[%s5 + $0x10] sm:$0xf]
  %v503 = vld [vmem:[%s5 + $0x14] sm:$0xf]
  %v504 = vld [vmem:[%s5 + $0x18] sm:$0xf]
  %v505 = vld [vmem:[%s5 + $0x1c] sm:$0xf]
  %v506 = vld [vmem:[%s5 + $0x20] sm:$0xf]
  %v507 = vld [vmem:[%s5 + $0x24] sm:$0xf]
  %v508 = vld [vmem:[%s5 + $0x28] sm:$0xf]
  %v509 = vld [vmem:[%s5 + $0x2c] sm:$0xf]
  %v510 = vld [vmem:[%s5 + $0x30] sm:$0xf]
  %v511 = vld [vmem:[%s5 + $0x34] sm:$0xf]
  %v512 = vld [vmem:[%s5 + $0x38] sm:$0xf]
  %v513 = vld [vmem:[%s5 + $0x3c] sm:$0xf]
  %v514 = vld [vmem:[%s6] sm:$0x1]
  %v516 = vperm.slane %v514, 0
  %v534 = vunpack.c.l.b16 %v498
  %v535 = vunpack.c.l.b16 %v499
  %v536 = vunpack.c.l.b16 %v500
  %v537 = vunpack.c.l.b16 %v501
  %v538 = vunpack.c.l.b16 %v502
  %v539 = vunpack.c.l.b16 %v503
  %v540 = vunpack.c.l.b16 %v504
  %v541 = vunpack.c.l.b16 %v505
  %v542 = vunpack.c.l.b16 %v506
  %v543 = vunpack.c.l.b16 %v507
  %v544 = vunpack.c.l.b16 %v508
  %v545 = vunpack.c.l.b16 %v509
  %v546 = vunpack.c.l.b16 %v510
  %v547 = vunpack.c.l.b16 %v511
  %v548 = vunpack.c.l.b16 %v512
  %v549 = vunpack.c.l.b16 %v513
  %v550 = vpack.c.b16 %v535, %v534
  %v551 = vpack.c.b16 %v537, %v536
  %v552 = vpack.c.b16 %v539, %v538
  %v553 = vpack.c.b16 %v541, %v540
  %v554 = vpack.c.b16 %v543, %v542
  %v555 = vpack.c.b16 %v545, %v544
  %v556 = vpack.c.b16 %v547, %v546
  %v557 = vpack.c.b16 %v549, %v548
  %566 = vmatpush.bf16.msra.mxu0 %v557
  %567 = vmatpush.bf16.msra.mxu0 %v556
  %568 = vmatpush.bf16.msra.mxu0 %v555
  %569 = vmatpush.bf16.msra.mxu0 %v554
  %570 = vmatpush.bf16.msra.mxu0 %v553
  %571 = vmatpush.bf16.msra.mxu0 %v552
  %572 = vmatpush.bf16.msra.mxu0 %v551
  %573 = vmatpush.bf16.msra.mxu0 %v550
  %574 = vmatmul.bf16.gmra.mxu0 %v485
  %v575 = vpop.f32.mrf.mxu0
  %v576 = vadd.f32 %v516, %v575
  %v577 = vpop.f32.mrf.mxu0
  %v578 = vadd.f32 %v516, %v577
  %579 = vmatmul.bf16.gmra.mxu0 %v486
  %v580 = vpop.f32.mrf.mxu0
  %v581 = vadd.f32 %v516, %v580
  %v582 = vpop.f32.mrf.mxu0
  %v583 = vadd.f32 %v516, %v582
  %584 = vmatmul.bf16.gmra.mxu0 %v487
  %v585 = vpop.f32.mrf.mxu0
  %v586 = vadd.f32 %v516, %v585
  %v587 = vpop.f32.mrf.mxu0
  %v588 = vadd.f32 %v516, %v587
  %589 = vmatmul.bf16.gmra.mxu0 %v488
  %v590 = vpop.f32.mrf.mxu0
  %v591 = vadd.f32 %v516, %v590
  %v592 = vpop.f32.mrf.mxu0
  %v593 = vadd.f32 %v516, %v592
  %594 = vmatmul.bf16.gmra.mxu0 %v489
  %v595 = vpop.f32.mrf.mxu0
  %v596 = vadd.f32 %v516, %v595
  %v597 = vpop.f32.mrf.mxu0
  %v598 = vadd.f32 %v516, %v597
  %599 = vmatmul.bf16.gmra.mxu0 %v490
  %v600 = vpop.f32.mrf.mxu0
  %v601 = vadd.f32 %v516, %v600
  %v602 = vpop.f32.mrf.mxu0
  %v603 = vadd.f32 %v516, %v602
  %604 = vmatmul.bf16.gmra.mxu0 %v491
  %v605 = vpop.f32.mrf.mxu0
  %v606 = vadd.f32 %v516, %v605
  %v607 = vpop.f32.mrf.mxu0
  %v608 = vadd.f32 %v516, %v607
  %609 = vmatmul.bf16.gmra.mxu0 %v492
  %v610 = vpop.f32.mrf.mxu0
  %v611 = vadd.f32 %v516, %v610
  %v612 = vpop.f32.mrf.mxu0
  %v613 = vadd.f32 %v516, %v612
  %614 = vmatmul.bf16.gmra.mxu0 %v493
  %v615 = vpop.f32.mrf.mxu0
  %v616 = vadd.f32 %v516, %v615
  %v617 = vpop.f32.mrf.mxu0
  %v618 = vadd.f32 %v516, %v617
  %619 = vmatmul.bf16.gmra.mxu0 %v494
  %v620 = vpop.f32.mrf.mxu0
  %v621 = vadd.f32 %v516, %v620
  %v622 = vpop.f32.mrf.mxu0
  %v623 = vadd.f32 %v516, %v622
  %624 = vmatmul.bf16.gmra.mxu0 %v495
  %v625 = vpop.f32.mrf.mxu0
  %v626 = vadd.f32 %v516, %v625
  %v627 = vpop.f32.mrf.mxu0
  %v628 = vadd.f32 %v516, %v627
  %629 = vmatmul.bf16.gmra.mxu0 %v496
  %v630 = vpop.f32.mrf.mxu0
  %v631 = vadd.f32 %v516, %v630
  %v632 = vpop.f32.mrf.mxu0
  %v633 = vadd.f32 %v516, %v632
  %634 = vmatmul.bf16.gmra.mxu0 %v497
  %v635 = vpop.f32.mrf.mxu0
  %v636 = vadd.f32 %v516, %v635
  %v637 = vpop.f32.mrf.mxu0
  %v638 = vadd.f32 %v516, %v637
  %639 = vdwg.mxu0
  %v640 = vmax.f32 %v576, 0.0
  %v641 = vmax.f32 %v578, 0.0
  %v642 = vmax.f32 %v581, 0.0
  %v643 = vmax.f32 %v583, 0.0
  %v644 = vmax.f32 %v586, 0.0
  %v645 = vmax.f32 %v588, 0.0
  %v646 = vmax.f32 %v591, 0.0
  %v647 = vmax.f32 %v593, 0.0
  %v648 = vmax.f32 %v596, 0.0
  %v649 = vmax.f32 %v598, 0.0
  %v650 = vmax.f32 %v601, 0.0
  %v651 = vmax.f32 %v603, 0.0
  %v652 = vmax.f32 %v606, 0.0
  %v653 = vmax.f32 %v608, 0.0
  %v654 = vmax.f32 %v611, 0.0
  %v655 = vmax.f32 %v613, 0.0
  %v656 = vmax.f32 %v616, 0.0
  %v657 = vmax.f32 %v618, 0.0
  %v658 = vmax.f32 %v621, 0.0
  %v659 = vmax.f32 %v623, 0.0
  %v660 = vmax.f32 %v626, 0.0
  %v661 = vmax.f32 %v628, 0.0
  %v662 = vmax.f32 %v631, 0.0
  %v663 = vmax.f32 %v633, 0.0
  %v664 = vmax.f32 %v636, 0.0
  %v665 = vmax.f32 %v638, 0.0
  %v666 = vpack.c.bf16 %v641, %v640
  %v667 = vpack.c.bf16 %v643, %v642
  %v668 = vpack.c.bf16 %v645, %v644
  %v669 = vpack.c.bf16 %v647, %v646
  %v670 = vpack.c.bf16 %v649, %v648
  %v671 = vpack.c.bf16 %v651, %v650
  %v672 = vpack.c.bf16 %v653, %v652
  %v673 = vpack.c.bf16 %v655, %v654
  %v674 = vpack.c.bf16 %v657, %v656
  %v675 = vpack.c.bf16 %v659, %v658
  %v676 = vpack.c.bf16 %v661, %v660
  %v677 = vpack.c.bf16 %v663, %v662
  %v678 = vpack.c.bf16 %v665, %v664
  %v679 = vld [vmem:[%s7] sm:$0xf]
  %v680 = vld [vmem:[%s7 + $0x4] sm:$0xf]
  %v681 = vld [vmem:[%s7 + $0x8] sm:$0xf]
  %v682 = vld [vmem:[%s7 + $0xc] sm:$0xf]
  %v683 = vld [vmem:[%s7 + $0x10] sm:$0xf]
  %v684 = vld [vmem:[%s7 + $0x14] sm:$0xf]
  %v685 = vld [vmem:[%s7 + $0x18] sm:$0xf]
  %v686 = vld [vmem:[%s7 + $0x1c] sm:$0xf]
  %v687 = vld [vmem:[%s7 + $0x20] sm:$0xf]
  %v688 = vld [vmem:[%s7 + $0x24] sm:$0xf]
  %v689 = vld [vmem:[%s7 + $0x28] sm:$0xf]
  %v690 = vld [vmem:[%s7 + $0x2c] sm:$0xf]
  %v691 = vld [vmem:[%s7 + $0x30] sm:$0xf]
  %v692 = vld [vmem:[%s7 + $0x34] sm:$0xf]
  %v693 = vld [vmem:[%s7 + $0x38] sm:$0xf]
  %v694 = vld [vmem:[%s7 + $0x3c] sm:$0xf]
  %v695 = vld [vmem:[%s8] sm:$0x1]
  %v697 = vperm.slane %v695, 0
  %v715 = vunpack.c.l.b16 %v679
  %v716 = vunpack.c.l.b16 %v680
  %v717 = vunpack.c.l.b16 %v681
  %v718 = vunpack.c.l.b16 %v682
  %v719 = vunpack.c.l.b16 %v683
  %v720 = vunpack.c.l.b16 %v684
  %v721 = vunpack.c.l.b16 %v685
  %v722 = vunpack.c.l.b16 %v686
  %v723 = vunpack.c.l.b16 %v687
  %v724 = vunpack.c.l.b16 %v688
  %v725 = vunpack.c.l.b16 %v689
  %v726 = vunpack.c.l.b16 %v690
  %v727 = vunpack.c.l.b16 %v691
  %v728 = vunpack.c.l.b16 %v692
  %v729 = vunpack.c.l.b16 %v693
  %v730 = vunpack.c.l.b16 %v694
  %v731 = vpack.c.b16 %v716, %v715
  %v732 = vpack.c.b16 %v718, %v717
  %v733 = vpack.c.b16 %v720, %v719
  %v734 = vpack.c.b16 %v722, %v721
  %v735 = vpack.c.b16 %v724, %v723
  %v736 = vpack.c.b16 %v726, %v725
  %v737 = vpack.c.b16 %v728, %v727
  %v738 = vpack.c.b16 %v730, %v729
  %747 = vmatpush.bf16.msra.mxu0 %v738
  %748 = vmatpush.bf16.msra.mxu0 %v737
  %749 = vmatpush.bf16.msra.mxu0 %v736
  %750 = vmatpush.bf16.msra.mxu0 %v735
  %751 = vmatpush.bf16.msra.mxu0 %v734
  %752 = vmatpush.bf16.msra.mxu0 %v733
  %753 = vmatpush.bf16.msra.mxu0 %v732
  %754 = vmatpush.bf16.msra.mxu0 %v731
  %755 = vmatmul.bf16.gmra.mxu0 %v666
  %v756 = vpop.f32.mrf.mxu0
  %v757 = vadd.f32 %v697, %v756
  %v758 = vpop.f32.mrf.mxu0
  %v759 = vadd.f32 %v697, %v758
  %760 = vmatmul.bf16.gmra.mxu0 %v667
  %v761 = vpop.f32.mrf.mxu0
  %v762 = vadd.f32 %v697, %v761
  %v763 = vpop.f32.mrf.mxu0
  %v764 = vadd.f32 %v697, %v763
  %765 = vmatmul.bf16.gmra.mxu0 %v668
  %v766 = vpop.f32.mrf.mxu0
  %v767 = vadd.f32 %v697, %v766
  %v768 = vpop.f32.mrf.mxu0
  %v769 = vadd.f32 %v697, %v768
  %770 = vmatmul.bf16.gmra.mxu0 %v669
  %v771 = vpop.f32.mrf.mxu0
  %v772 = vadd.f32 %v697, %v771
  %v773 = vpop.f32.mrf.mxu0
  %v774 = vadd.f32 %v697, %v773
  %775 = vmatmul.bf16.gmra.mxu0 %v670
  %v776 = vpop.f32.mrf.mxu0
  %v777 = vadd.f32 %v697, %v776
  %v778 = vpop.f32.mrf.mxu0
  %v779 = vadd.f32 %v697, %v778
  %780 = vmatmul.bf16.gmra.mxu0 %v671
  %v781 = vpop.f32.mrf.mxu0
  %v782 = vadd.f32 %v697, %v781
  %v783 = vpop.f32.mrf.mxu0
  %v784 = vadd.f32 %v697, %v783
  %785 = vmatmul.bf16.gmra.mxu0 %v672
  %v786 = vpop.f32.mrf.mxu0
  %v787 = vadd.f32 %v697, %v786
  %v788 = vpop.f32.mrf.mxu0
  %v789 = vadd.f32 %v697, %v788
  %790 = vmatmul.bf16.gmra.mxu0 %v673
  %v791 = vpop.f32.mrf.mxu0
  %v792 = vadd.f32 %v697, %v791
  %v793 = vpop.f32.mrf.mxu0
  %v794 = vadd.f32 %v697, %v793
  %795 = vmatmul.bf16.gmra.mxu0 %v674
  %v796 = vpop.f32.mrf.mxu0
  %v797 = vadd.f32 %v697, %v796
  %v798 = vpop.f32.mrf.mxu0
  %v799 = vadd.f32 %v697, %v798
  %800 = vmatmul.bf16.gmra.mxu0 %v675
  %v801 = vpop.f32.mrf.mxu0
  %v802 = vadd.f32 %v697, %v801
  %v803 = vpop.f32.mrf.mxu0
  %v804 = vadd.f32 %v697, %v803
  %805 = vmatmul.bf16.gmra.mxu0 %v676
  %v806 = vpop.f32.mrf.mxu0
  %v807 = vadd.f32 %v697, %v806
  %v808 = vpop.f32.mrf.mxu0
  %v809 = vadd.f32 %v697, %v808
  %810 = vmatmul.bf16.gmra.mxu0 %v677
  %v811 = vpop.f32.mrf.mxu0
  %v812 = vadd.f32 %v697, %v811
  %v813 = vpop.f32.mrf.mxu0
  %v814 = vadd.f32 %v697, %v813
  %815 = vmatmul.bf16.gmra.mxu0 %v678
  %v816 = vpop.f32.mrf.mxu0
  %v817 = vadd.f32 %v697, %v816
  %v818 = vpop.f32.mrf.mxu0
  %v819 = vadd.f32 %v697, %v818
  %820 = vdwg.mxu0
  %821 = vst [vmem:[%s9] sm:$0xff] %v757
  %822 = vst [vmem:[%s9 + $0x8] sm:$0xff] %v759
  %823 = vst [vmem:[%s9 + $0x10] sm:$0xff] %v762
  %824 = vst [vmem:[%s9 + $0x18] sm:$0xff] %v764
  %825 = vst [vmem:[%s9 + $0x20] sm:$0xff] %v767
  %826 = vst [vmem:[%s9 + $0x28] sm:$0xff] %v769
  %827 = vst [vmem:[%s9 + $0x30] sm:$0xff] %v772
  %828 = vst [vmem:[%s9 + $0x38] sm:$0xff] %v774
  %829 = vst [vmem:[%s9 + $0x40] sm:$0xff] %v777
  %830 = vst [vmem:[%s9 + $0x48] sm:$0xff] %v779
  %831 = vst [vmem:[%s9 + $0x50] sm:$0xff] %v782
  %832 = vst [vmem:[%s9 + $0x58] sm:$0xff] %v784
  %833 = vst [vmem:[%s9 + $0x60] sm:$0xff] %v787
  %834 = vst [vmem:[%s9 + $0x68] sm:$0xff] %v789
  %835 = vst [vmem:[%s9 + $0x70] sm:$0xff] %v792
  %836 = vst [vmem:[%s9 + $0x78] sm:$0xff] %v794
  %837 = vst [vmem:[%s9 + $0x80] sm:$0xff] %v797
  %838 = vst [vmem:[%s9 + $0x88] sm:$0xff] %v799
  %839 = vst [vmem:[%s9 + $0x90] sm:$0xff] %v802
  %840 = vst [vmem:[%s9 + $0x98] sm:$0xff] %v804
  %841 = vst [vmem:[%s9 + $0xa0] sm:$0xff] %v807
  %842 = vst [vmem:[%s9 + $0xa8] sm:$0xff] %v809
  %843 = vst [vmem:[%s9 + $0xb0] sm:$0xff] %v812
  %844 = vst [vmem:[%s9 + $0xb8] sm:$0xff] %v814
  %845 = vst [vmem:[%s9 + $0xc0] sm:$0xff] %v817
  %846 = vst [vmem:[%s9 + $0xc8] sm:$0xff] %v819
  // Predicated region
  $region38: #{_cnn_forward_padded.1} parent=0 // pred_check
    _
  $region39: #{_cnn_forward_padded.1} parent=0 // pred_check_branch
    %848 = sbr.rel (0) target = $region41
  $region40: #{_cnn_forward_padded.1} parent=0 // pred_region
    _
  $region41: #{_cnn_forward_padded.1} parent=0 // pred_fallthru
    _
  // Predicated region
  $region42: #{_cnn_forward_padded.1} parent=0 // pred_check
    _
  $region43: #{_cnn_forward_padded.1} parent=0 // pred_check_branch
    %850 = sbr.rel (0) target = $region45
  $region44: #{_cnn_forward_padded.1} parent=0 // pred_region
    _
  $region45: #{_cnn_forward_padded.1} parent=0 // pred_fallthru
    _

</llo_original>
